<compile_context>
chip_gen: v7x
topology: tpu7x:2x2x1
jax: 0.10.0
libtpu: 0.0.40
codegen_flags: <defaults>
</compile_context>

<pallas_src>
import functools

import jax
import jax.numpy as jnp
from jax import lax
from jax.experimental import pallas as pl
from jax.experimental.pallas import tpu as pltpu


# ----------------------------------------------------------------------------
# Kernels
# ----------------------------------------------------------------------------
def _gate(pooled, w1, b1, w2, b2):
    """Squeeze-excite gate: sigmoid(relu(pooled @ W1^T + b1) @ W2^T + b2)."""
    h = lax.dot_general(pooled, w1, (((1,), (1,)), ((), ())),
                        preferred_element_type=jnp.float32) + b1
    h = jnp.maximum(h, 0.0)
    logits = lax.dot_general(h, w2, (((1,), (1,)), ((), ())),
                             preferred_element_type=jnp.float32) + b2
    return jax.nn.sigmoid(logits)


def _fused_kernel(x_ref, w1_ref, b1_ref, w2_ref, b2_ref, o_ref, *, inv_hw):
    """Single pass: pool + gate + rescale for one (B_blk, C, HW) block."""
    x = x_ref[...]                                               # native dtype
    pooled = jnp.sum(x.astype(jnp.float32), axis=-1) * inv_hw    # (B, C) f32
    y = _gate(pooled, w1_ref[...], b1_ref[...], w2_ref[...], b2_ref[...])
    # Rescale in the native dtype: avoids a full-tile f32 temporary / cast.
    o_ref[...] = x * y[:, :, None].astype(x.dtype)


def _pool_gate_kernel(x_ref, w1_ref, b1_ref, w2_ref, b2_ref, y_ref, acc_ref,
                      *, inv_hw, hw_total, hw_tile):
    """Pass 1: accumulate spatial sums across H*W tiles; emit gate on last tile."""
    hi = pl.program_id(1)

    @pl.when(hi == 0)
    def _init():
        acc_ref[...] = jnp.zeros_like(acc_ref)

    x = x_ref[...].astype(jnp.float32)                           # (B, C, hw_tile)
    if hw_total % hw_tile != 0:
        # Masked tail tile: zero out out-of-bounds lanes before accumulating.
        lane = lax.broadcasted_iota(jnp.int32, x.shape, 2)
        x = jnp.where(hi * hw_tile + lane < hw_total, x, 0.0)
    acc_ref[...] += jnp.sum(x, axis=-1)                          # f32 partial sums

    @pl.when(hi == pl.num_programs(1) - 1)
    def _finalize():
        pooled = acc_ref[...] * inv_hw                           # (B, C) mean
        y = _gate(pooled, w1_ref[...], b1_ref[...], w2_ref[...], b2_ref[...])
        y_ref[...] = y[:, :, None]                               # (B, C, 1)


def _scale_kernel(y_ref, x_ref, o_ref):
    """Pass 2: out = x * gate, tile by tile (pure bandwidth, native dtype)."""
    x = x_ref[...]
    o_ref[...] = x * y_ref[...].astype(x.dtype)                  # (B,C,1) bcast


# ----------------------------------------------------------------------------
# Hardware queries / tiling plan
# ----------------------------------------------------------------------------
def _vmem_limit_bytes():
    """Scoped VMEM limit with headroom, based on actual chip VMEM capacity."""
    try:
        cap = int(pltpu.get_tpu_info().vmem_capacity_bytes)
    except Exception:
        cap = 64 * 1024 * 1024  # conservative fallback (v7x-sized)
    return int(min(96 * 1024 * 1024, (cap * 3) // 4))


def _tensorcores_per_chip():
    """2 on v7x (2 TCs share HBM/DMA); 1 on v5e/v6e."""
    # TODO(synk): v4/v5p megacore is treated as single-TC here (conservative).
    try:
        kind = (jax.devices()[0].device_kind or "").lower()
        if "v7" in kind:
            return 2
    except Exception:
        pass
    return 1


def _plan(n, c, hw, itemsize, tile_budget, multi_tc):
    """Pick (b_blk, hw_tile): lane-aligned cdiv tiling sized to the budget."""
    # --- spatial tile ---
    if c * hw * itemsize <= tile_budget:
        hw_tile = hw                                   # fused-path candidate
    else:
        lanes = max(128, ((tile_budget // (c * itemsize)) // 128) * 128)
        hw_tile = min(lanes, pl.cdiv(hw, 128) * 128)   # masked tail handles rest

    # v7x, N == 1: the batch axis gives no parallelism; split H*W so pass 2's
    # "parallel" spatial axis can feed both TensorCores (only worth it when the
    # image is big enough that per-step overhead is negligible).
    if (multi_tc and n == 1 and hw_tile >= hw and hw >= 4 * 128
            and c * hw * itemsize >= (1 << 20)):
        hw_tile = max(128, pl.cdiv(pl.cdiv(hw, 2), 128) * 128)

    hb = pl.cdiv(hw, hw_tile)

    # --- batch blocking ---
    # Single-TC chips: let b_blk grow to all of N (fewer, bigger DMAs).
    # 2-TC chips: keep >= 2 batch blocks when N > 1 so both cores get work.
    b_cap = n if (n == 1 or not multi_tc) else max(1, n // 2)
    b_blk = 1
    for d in range(1, b_cap + 1):
        if n % d == 0 and d * c * hw_tile * itemsize <= tile_budget:
            b_blk = d
    return b_blk, hw_tile, hb


# ----------------------------------------------------------------------------
# Wrapper
# ----------------------------------------------------------------------------
def channel_attention(x_nchw, w1, b1, w2, b2, *, tile_budget_bytes=None):
    """x_nchw: (N, C, H, W); w1: (M, C), b1: (M,), w2: (C, M), b2: (C,)."""
    N, C, H, W = x_nchw.shape
    M = w1.shape[0]
    HW = H * W

    x_flat = x_nchw.reshape(N, C, HW)              # keep native dtype in HBM
    dtype = x_flat.dtype
    itemsize = jnp.dtype(dtype).itemsize

    w1 = jnp.asarray(w1, jnp.float32)              # (M, C) -- untransposed
    b1r = jnp.asarray(b1, jnp.float32).reshape(1, M)
    w2 = jnp.asarray(w2, jnp.float32)              # (C, M) -- untransposed
    b2r = jnp.asarray(b2, jnp.float32).reshape(1, C)

    vmem_limit = _vmem_limit_bytes()
    multi_tc = _tensorcores_per_chip() > 1
    if tile_budget_bytes is None:
        # ~1/7 of the scoped limit: 2x double-buffered input + 2x output + temps.
        tile_budget_bytes = max(512 * 1024, vmem_limit // 7)

    b_blk, hw_tile, hb = _plan(N, C, HW, itemsize, tile_budget_bytes, multi_tc)
    nb = N // b_blk
    inv_hw = 1.0 / float(HW)

    if hb == 1:
        # Fused single pass: read x once, write once.
        out = pl.pallas_call(
            functools.partial(_fused_kernel, inv_hw=inv_hw),
            out_shape=jax.ShapeDtypeStruct((N, C, HW), dtype),
            grid_spec=pltpu.PrefetchScalarGridSpec(
                num_scalar_prefetch=0,
                grid=(nb,),
                in_specs=[
                    pl.BlockSpec((b_blk, C, HW), lambda n: (n, 0, 0)),
                    pl.BlockSpec((M, C), lambda n: (0, 0)),
                    pl.BlockSpec((1, M), lambda n: (0, 0)),
                    pl.BlockSpec((C, M), lambda n: (0, 0)),
                    pl.BlockSpec((1, C), lambda n: (0, 0)),
                ],
                out_specs=pl.BlockSpec((b_blk, C, HW), lambda n: (n, 0, 0)),
            ),
            compiler_params=pltpu.CompilerParams(
                dimension_semantics=("parallel",),
                vmem_limit_bytes=vmem_limit),
        )(x_flat, w1, b1r, w2, b2r)
    else:
        # Pass 1: pooled mean + gate, H*W tiled (reduction axis last, "arbitrary").
        y = pl.pallas_call(
            functools.partial(_pool_gate_kernel, inv_hw=inv_hw,
                              hw_total=HW, hw_tile=hw_tile),
            out_shape=jax.ShapeDtypeStruct((N, C, 1), jnp.float32),
            grid_spec=pltpu.PrefetchScalarGridSpec(
                num_scalar_prefetch=0,
                grid=(nb, hb),
                in_specs=[
                    pl.BlockSpec((b_blk, C, hw_tile), lambda n, h: (n, 0, h)),
                    pl.BlockSpec((M, C), lambda n, h: (0, 0)),
                    pl.BlockSpec((1, M), lambda n, h: (0, 0)),
                    pl.BlockSpec((C, M), lambda n, h: (0, 0)),
                    pl.BlockSpec((1, C), lambda n, h: (0, 0)),
                ],
                out_specs=pl.BlockSpec((b_blk, C, 1), lambda n, h: (n, 0, 0)),
                scratch_shapes=[pltpu.VMEM((b_blk, C), jnp.float32)],
            ),
            compiler_params=pltpu.CompilerParams(
                dimension_semantics=("parallel", "arbitrary"),
                vmem_limit_bytes=vmem_limit),
        )(x_flat, w1, b1r, w2, b2r)

        # Pass 2: rescale tile-by-tile, fully parallel.
        x_in_spec = pl.BlockSpec((b_blk, C, hw_tile), lambda n, h: (n, 0, h))
        if multi_tc:
            # v7x: smaller tiles + 3.2 TB/s HBM expose DMA turnaround; deepen
            # the input pipeline (costs one extra tile of VMEM).
            try:
                x_in_spec = pl.BlockSpec((b_blk, C, hw_tile),
                                         lambda n, h: (n, 0, h),
                                         pipeline_mode=pl.Buffered(3))
            except TypeError:
                pass
        out = pl.pallas_call(
            _scale_kernel,
            out_shape=jax.ShapeDtypeStruct((N, C, HW), dtype),
            grid_spec=pltpu.PrefetchScalarGridSpec(
                num_scalar_prefetch=0,
                grid=(nb, hb),
                in_specs=[
                    pl.BlockSpec((b_blk, C, 1), lambda n, h: (n, 0, 0)),
                    x_in_spec,
                ],
                out_specs=pl.BlockSpec((b_blk, C, hw_tile),
                                       lambda n, h: (n, 0, h)),
            ),
            compiler_params=pltpu.CompilerParams(
                dimension_semantics=("parallel", "parallel"),
                vmem_limit_bytes=vmem_limit),
        )(y, x_flat)

    return out.reshape(N, C, H, W)


# ----------------------------------------------------------------------------
# Pure-JAX reference (matches PyTorch semantics)
# ----------------------------------------------------------------------------
def _reference(x_nchw, w1, b1, w2, b2):
    pooled = jnp.mean(x_nchw.astype(jnp.float32), axis=(2, 3))   # (N, C)
    h = jnp.maximum(pooled @ w1.T + b1, 0.0)                     # (N, M)
    y = jax.nn.sigmoid(h @ w2.T + b2)                            # (N, C)
    return x_nchw.astype(jnp.float32) * y[:, :, None, None]


if __name__ == "__main__":
    # Shapes consistent with the module: num_feat=32, squeeze_factor=8 -> mid=4.
    N, C, H, W = 2, 32, 16, 16
    squeeze_factor = 8
    M = C // squeeze_factor

    key = jax.random.PRNGKey(0)
    kx, k1, k2, k3, k4 = jax.random.split(key, 5)

    x = jax.random.normal(kx, (N, C, H, W), dtype=jnp.float32)
    w1 = 0.1 * jax.random.normal(k1, (M, C), dtype=jnp.float32)
    b1 = 0.1 * jax.random.normal(k2, (M,), dtype=jnp.float32)
    w2 = 0.1 * jax.random.normal(k3, (C, M), dtype=jnp.float32)
    b2 = 0.1 * jax.random.normal(k4, (C,), dtype=jnp.float32)

    ref = _reference(x, w1, b1, w2, b2)

    # 1) Fused single-pass path (small image fits one VMEM-budget tile).
    out = jax.block_until_ready(channel_attention(x, w1, b1, w2, b2))
    assert out.shape == (N, C, H, W)
    assert jnp.allclose(out, ref, atol=1e-5, rtol=1e-5), "fused path mismatch"

    # 2) Split pool->gate->scale path (force a tiny tile budget so H*W is tiled
    #    into 128-lane chunks and the f32 accumulator path is exercised).
    out_split = jax.block_until_ready(
        channel_attention(x, w1, b1, w2, b2, tile_budget_bytes=20 * 1024))
    assert jnp.allclose(out_split, ref, atol=1e-5, rtol=1e-5), "split path mismatch"

    # 3) Split path with H*W not a multiple of the tile (masked tail tile).
    x_odd = jax.random.normal(kx, (N, C, 15, 15), dtype=jnp.float32)
    ref_odd = _reference(x_odd, w1, b1, w2, b2)
    out_odd = jax.block_until_ready(
        channel_attention(x_odd, w1, b1, w2, b2, tile_budget_bytes=20 * 1024))
    assert jnp.allclose(out_odd, ref_odd, atol=1e-5, rtol=1e-5), \
        "masked-tail path mismatch"

    # 4) bf16 input stays bf16 end-to-end (halves HBM traffic); loose tolerance.
    x16 = x.astype(jnp.bfloat16)
    out16 = jax.block_until_ready(channel_attention(x16, w1, b1, w2, b2))
    assert out16.dtype == jnp.bfloat16
    ref16 = _reference(x16, w1, b1, w2, b2)
    assert jnp.allclose(out16.astype(jnp.float32), ref16, atol=5e-2, rtol=5e-2), \
        "bf16 path mismatch"

    print("KERNEL_OK")
</pallas_src>

<mosaic_0001>
module attributes {stable_mosaic.version = 11 : i64} {
  func.func @_fused_kernel(%arg0: i32, %arg1: memref<2x32x256xf32, #tpu.memory_space<vmem>>, %arg2: memref<4x32xf32, #tpu.memory_space<vmem>>, %arg3: memref<1x4xf32, #tpu.memory_space<vmem>>, %arg4: memref<32x4xf32, #tpu.memory_space<vmem>>, %arg5: memref<1x32xf32, #tpu.memory_space<vmem>>, %arg6: memref<2x32x256xf32, #tpu.memory_space<vmem>>) attributes {dimension_semantics = [#tpu.dimension_semantics<parallel>], iteration_bounds = array<i64: 1>, scalar_prefetch = 0 : i64, scratch_operands = 0 : i64, tpu.core_type = #tpu.core_type<tc>, window_params = [{transform_indices = @transform_0, window_bounds = array<i64: 2, 32, 256>}, {pipeline_mode = #tpu.pipeline_mode<synchronous>, transform_indices = @transform_1, window_bounds = array<i64: 4, 32>}, {pipeline_mode = #tpu.pipeline_mode<synchronous>, transform_indices = @transform_2, window_bounds = array<i64: 1, 4>}, {pipeline_mode = #tpu.pipeline_mode<synchronous>, transform_indices = @transform_3, window_bounds = array<i64: 32, 4>}, {pipeline_mode = #tpu.pipeline_mode<synchronous>, transform_indices = @transform_4, window_bounds = array<i64: 1, 32>}, {transform_indices = @transform_5, window_bounds = array<i64: 2, 32, 256>}]} {
    %c0 = arith.constant 0 : index
    %c0_0 = arith.constant 0 : index
    %c0_1 = arith.constant 0 : index
    %0 = vector.load %arg1[%c0, %c0_0, %c0_1] : memref<2x32x256xf32, #tpu.memory_space<vmem>>, vector<2x32x256xf32>
    %cst = arith.constant dense<0.000000e+00> : vector<2x32xf32>
    %1 = vector.multi_reduction <add>, %0, %cst [2] : vector<2x32x256xf32> to vector<2x32xf32>
    %cst_2 = arith.constant 3.906250e-03 : f32
    %2 = vector.broadcast %cst_2 : f32 to vector<2x32xf32>
    %3 = arith.mulf %1, %2 : vector<2x32xf32>
    %c0_3 = arith.constant 0 : index
    %c0_4 = arith.constant 0 : index
    %4 = vector.load %arg2[%c0_3, %c0_4] : memref<4x32xf32, #tpu.memory_space<vmem>>, vector<4x32xf32>
    %c0_5 = arith.constant 0 : index
    %c0_6 = arith.constant 0 : index
    %5 = vector.load %arg3[%c0_5, %c0_6] : memref<1x4xf32, #tpu.memory_space<vmem>>, vector<1x4xf32>
    %c0_7 = arith.constant 0 : index
    %c0_8 = arith.constant 0 : index
    %6 = vector.load %arg4[%c0_7, %c0_8] : memref<32x4xf32, #tpu.memory_space<vmem>>, vector<32x4xf32>
    %c0_9 = arith.constant 0 : index
    %c0_10 = arith.constant 0 : index
    %7 = vector.load %arg5[%c0_9, %c0_10] : memref<1x32xf32, #tpu.memory_space<vmem>>, vector<1x32xf32>
    %cst_11 = arith.constant dense<0.000000e+00> : vector<2x4xf32>
    %8 = tpu.matmul %3, %4, %cst_11 {dimension_numbers = #tpu.dot_dimension_numbers<[1], [1], [0], [0], [0, 0, 1, 0], [], []>} : vector<2x32xf32>, vector<4x32xf32>, vector<2x4xf32> -> vector<2x4xf32>
    %9 = vector.broadcast %5 : vector<1x4xf32> to vector<2x4xf32>
    %10 = arith.addf %8, %9 : vector<2x4xf32>
    %cst_12 = arith.constant 0.000000e+00 : f32
    %11 = vector.broadcast %cst_12 : f32 to vector<2x4xf32>
    %12 = arith.maximumf %10, %11 : vector<2x4xf32>
    %cst_13 = arith.constant dense<0.000000e+00> : vector<2x32xf32>
    %13 = tpu.matmul %12, %6, %cst_13 {dimension_numbers = #tpu.dot_dimension_numbers<[1], [1], [0], [0], [0, 0, 1, 0], [], []>} : vector<2x4xf32>, vector<32x4xf32>, vector<2x32xf32> -> vector<2x32xf32>
    %14 = vector.broadcast %7 : vector<1x32xf32> to vector<2x32xf32>
    %15 = arith.addf %13, %14 : vector<2x32xf32>
    %16 = arith.negf %15 : vector<2x32xf32>
    %17 = math.exp %16 : vector<2x32xf32>
    %cst_14 = arith.constant 1.000000e+00 : f32
    %18 = vector.broadcast %cst_14 : f32 to vector<2x32xf32>
    %19 = arith.addf %18, %17 : vector<2x32xf32>
    %20 = arith.divf %18, %19 : vector<2x32xf32>
    %21 = vector.shape_cast %20 : vector<2x32xf32> to vector<2x32x1xf32>
    %22 = vector.broadcast %21 : vector<2x32x1xf32> to vector<2x32x256xf32>
    %23 = arith.mulf %0, %22 : vector<2x32x256xf32>
    %c0_15 = arith.constant 0 : index
    %c0_16 = arith.constant 0 : index
    %c0_17 = arith.constant 0 : index
    %24 = vector.load %arg6[%c0_15, %c0_16, %c0_17] : memref<2x32x256xf32, #tpu.memory_space<vmem>>, vector<2x32x256xf32>
    tpu.vector_store %arg6[%c0_15, %c0_16, %c0_17], %23 {strides = array<i32>} : memref<2x32x256xf32, #tpu.memory_space<vmem>>, vector<2x32x256xf32>,
    return
  }
  func.func @transform_0(%arg0: i32) -> (i32, i32, i32) {
    %c0_i32 = arith.constant 0 : i32
    %c0_i32_0 = arith.constant 0 : i32
    %c0_i32_1 = arith.constant 0 : i32
    return %arg0, %c0_i32, %c0_i32_0 : i32, i32, i32
  }
  func.func @transform_1(%arg0: i32) -> (i32, i32) {
    %c0_i32 = arith.constant 0 : i32
    %c0_i32_0 = arith.constant 0 : i32
    %c0_i32_1 = arith.constant 0 : i32
    return %c0_i32, %c0_i32_0 : i32, i32
  }
  func.func @transform_2(%arg0: i32) -> (i32, i32) {
    %c0_i32 = arith.constant 0 : i32
    %c0_i32_0 = arith.constant 0 : i32
    %c0_i32_1 = arith.constant 0 : i32
    return %c0_i32, %c0_i32_0 : i32, i32
  }
  func.func @transform_3(%arg0: i32) -> (i32, i32) {
    %c0_i32 = arith.constant 0 : i32
    %c0_i32_0 = arith.constant 0 : i32
    %c0_i32_1 = arith.constant 0 : i32
    return %c0_i32, %c0_i32_0 : i32, i32
  }
  func.func @transform_4(%arg0: i32) -> (i32, i32) {
    %c0_i32 = arith.constant 0 : i32
    %c0_i32_0 = arith.constant 0 : i32
    %c0_i32_1 = arith.constant 0 : i32
    return %c0_i32, %c0_i32_0 : i32, i32
  }
  func.func @transform_5(%arg0: i32) -> (i32, i32, i32) {
    %c0_i32 = arith.constant 0 : i32
    %c0_i32_0 = arith.constant 0 : i32
    %c0_i32_1 = arith.constant 0 : i32
    return %arg0, %c0_i32, %c0_i32_0 : i32, i32, i32
  }
}

</mosaic_0001>

<llo_original>
// kernel: tpu_custom_call.1
$region0: #{tpu_custom_call.1}
  #allocation0 [shape = 'u32[]', space=smem, size = 0x4, offset = 0x4, fixed_abs, tag = 'smem constant byte address 0x4 - core index']
  #allocation1 [shape = 'u32[144,128]{1,0:T(1,128)}', space=vmem, size = 0x12000, scoped, tag = 'internal scratch']
  %s0 = inlined_call_operand.hbm [shape: f32[2,32,256], index: 0, kind: input, shape index: {}]
  %s1 = inlined_call_operand.vmem [shape: f32[4,32], index: 1, kind: input, shape index: {}]
  %s2 = inlined_call_operand.vmem [shape: f32[1,4], index: 2, kind: input, shape index: {}]
  %s3 = inlined_call_operand.vmem [shape: f32[32,4], index: 3, kind: input, shape index: {}]
  %s4 = inlined_call_operand.vmem [shape: f32[1,32], index: 4, kind: input, shape index: {}]
  %s5 = inlined_call_operand.hbm [shape: f32[2,32,256], index: 5, kind: output, shape index: {}]
  %s6 = sld [smem:[#allocation0]]
  $region34: #{tpu_custom_call.1} parent=0
    _
  %s8 = ssub.s32 1, %s6
  %s9 = scalar_select 0, %s8, %s6
  $region1: #{tpu_custom_call.1} parent=0
    #allocation2 [shape = 'u8[65536]{0}', space=vmem, size = 0x10000, scoped, tag = 'input window, operand 0, single buffered']
    #allocation3 [shape = 's32[1]{0}', space=sflag, size = 0x4, scoped, tag = 'scoped memory for tpu_custom_call.1']
    #allocation4 [shape = 's32[1]{0}', space=sflag, size = 0x4, scoped, tag = 'scoped memory for tpu_custom_call.1']
    #allocation5 [shape = 'u8[65536]{0}', space=vmem, size = 0x10000, scoped, tag = 'output window, operand 0, single buffered']
    %10 = vsyncpa [#allocation3], 0
    %11 = vsyncpa [#allocation4], 0
    // Predicated region
    $region2: #{tpu_custom_call.1} parent=1 // pred_check
      _
    $region3: #{tpu_custom_call.1} parent=1 // pred_check_branch
      %13 = sbr.rel (0) target = $region5
    $region4: #{tpu_custom_call.1} parent=1 // pred_region
      %s15 = ssub.s32 2048, 2048
      %16 = vsyncadd [#allocation3], %s15
      %s17 = sshll.u32 [#allocation2], 4
      %s18 = int_to_ptr.vmem [resolvable:$true] %s17
      %23 = dma.hbm_to_vmem [thread:$0]  %s0, 2048, %s18, [#allocation3], 256, 256, 16
    $region5: #{tpu_custom_call.1} parent=1 // pred_fallthru
      _
    // Predicated region
    $region6: #{tpu_custom_call.1} parent=1 // pred_check
      _
    $region7: #{tpu_custom_call.1} parent=1 // pred_check_branch
      %25 = sbr.rel (0) target = $region9
    $region8: #{tpu_custom_call.1} parent=1 // pred_region
      _
    $region9: #{tpu_custom_call.1} parent=1 // pred_fallthru
      _
    // Predicated region
    $region10: #{tpu_custom_call.1} parent=1 // pred_check
      _
    $region11: #{tpu_custom_call.1} parent=1 // pred_check_branch
      %27 = sbr.rel (0) target = $region13
    $region12: #{tpu_custom_call.1} parent=1 // pred_region
      _
    $region13: #{tpu_custom_call.1} parent=1 // pred_fallthru
      _
    // Predicated region
    $region14: #{tpu_custom_call.1} parent=1 // pred_check
      _
    $region15: #{tpu_custom_call.1} parent=1 // pred_check_branch
      %29 = sbr.rel (0) target = $region17
    $region16: #{tpu_custom_call.1} parent=1 // pred_region
      _
    $region17: #{tpu_custom_call.1} parent=1 // pred_fallthru
      _
    // Predicated region
    $region18: #{tpu_custom_call.1} parent=1 // pred_check
      _
    $region19: #{tpu_custom_call.1} parent=1 // pred_check_branch
      %31 = sbr.rel (0) target = $region21
    $region20: #{tpu_custom_call.1} parent=1 // pred_region
      _
    $region21: #{tpu_custom_call.1} parent=1 // pred_fallthru
      _
    // Predicated region
    $region22: #{tpu_custom_call.1} parent=1 // pred_check
      _
    $region23: #{tpu_custom_call.1} parent=1 // pred_check_branch
      %33 = sbr.rel (0) target = $region25
    $region24: #{tpu_custom_call.1} parent=1 // pred_region
      %34 = dma.done [#allocation3], 2048
    $region25: #{tpu_custom_call.1} parent=1 // pred_fallthru
      _
    %v35 = vld [vmem:[#allocation2] sm:$0xff]
    %v36 = vld [vmem:[#allocation2 + $0x8] sm:$0xff]
    %v37 = vld [vmem:[#allocation2 + $0x10] sm:$0xff]
    %v38 = vld [vmem:[#allocation2 + $0x18] sm:$0xff]
    %v39 = vld [vmem:[#allocation2 + $0x20] sm:$0xff]
    %v40 = vld [vmem:[#allocation2 + $0x28] sm:$0xff]
    %v41 = vld [vmem:[#allocation2 + $0x30] sm:$0xff]
    %v42 = vld [vmem:[#allocation2 + $0x38] sm:$0xff]
    %v43 = vld [vmem:[#allocation2 + $0x40] sm:$0xff]
    %v44 = vld [vmem:[#allocation2 + $0x48] sm:$0xff]
    %v45 = vld [vmem:[#allocation2 + $0x50] sm:$0xff]
    %v46 = vld [vmem:[#allocation2 + $0x58] sm:$0xff]
    %v47 = vld [vmem:[#allocation2 + $0x60] sm:$0xff]
    %v48 = vld [vmem:[#allocation2 + $0x68] sm:$0xff]
    %v49 = vld [vmem:[#allocation2 + $0x70] sm:$0xff]
    %v50 = vld [vmem:[#allocation2 + $0x78] sm:$0xff]
    %v51 = vadd.f32 %v35, %v36
    %52 = vadd.xlane.f32.xlu0 %v51
    %v53 = vpop.xlane.xlu0 %52
    %v54 = vadd.f32 %v37, %v38
    %55 = vadd.xlane.f32.xlu0 %v54
    %v56 = vpop.xlane.xlu0 %55
    %v57 = vadd.f32 %v39, %v40
    %58 = vadd.xlane.f32.xlu0 %v57
    %v59 = vpop.xlane.xlu0 %58
    %v60 = vadd.f32 %v41, %v42
    %61 = vadd.xlane.f32.xlu0 %v60
    %v62 = vpop.xlane.xlu0 %61
    %v63 = vadd.f32 %v43, %v44
    %64 = vadd.xlane.f32.xlu0 %v63
    %v65 = vpop.xlane.xlu0 %64
    %v66 = vadd.f32 %v45, %v46
    %67 = vadd.xlane.f32.xlu0 %v66
    %v68 = vpop.xlane.xlu0 %67
    %v69 = vadd.f32 %v47, %v48
    %70 = vadd.xlane.f32.xlu0 %v69
    %v71 = vpop.xlane.xlu0 %70
    %v72 = vadd.f32 %v49, %v50
    %73 = vadd.xlane.f32.xlu0 %v72
    %v74 = vpop.xlane.xlu0 %73
    %v75 = vmul.f32 %v53, 0.00390625
    %v76 = vmul.f32 %v56, 0.00390625
    %v77 = vmul.f32 %v59, 0.00390625
    %v78 = vmul.f32 %v62, 0.00390625
    %v79 = vmul.f32 %v65, 0.00390625
    %v80 = vmul.f32 %v68, 0.00390625
    %v81 = vmul.f32 %v71, 0.00390625
    %v82 = vmul.f32 %v74, 0.00390625
    %v83 = vld [vmem:[%s1] sm:$0xf]
    %v84 = vld [vmem:[%s2] sm:$0x1]
    %v85 = vld [vmem:[%s3] sm:$0xff]
    %v86 = vld [vmem:[%s3 + $0x8] sm:$0xff]
    %v87 = vld [vmem:[%s3 + $0x10] sm:$0xff]
    %v88 = vld [vmem:[%s3 + $0x18] sm:$0xff]
    %v89 = vld [vmem:[%s4] sm:$0x1]
    %v91 = vlaneseq
    %v92 = vshrl.u32 %v91, 7
    %v93 = vsub.s32 0, %v92
    %v94 = vrot.slane %v84, %v93
    %v104 = vlaneseq
    %v105 = vand.u32 %v104, 127
    %v106 = vlaneseq
    %v107 = vshrl.u32 %v106, 7
    %v108 = vsub.s32 %v105, %v107
    %v109 = vrot.slane %v75, %v108
    %v110 = vadd.s32 %v105, 4294967288
    %v111 = vlaneseq
    %v112 = vshrl.u32 %v111, 7
    %v113 = vsub.s32 %v110, %v112
    %v114 = vrot.slane %v76, %v113
    %vm115 = vcmask 130112
    %v116 = vsel %vm115, %v114, %v109
    %v117 = vadd.s32 %v105, 4294967280
    %v118 = vlaneseq
    %v119 = vshrl.u32 %v118, 7
    %v120 = vsub.s32 %v117, %v119
    %v121 = vrot.slane %v77, %v120
    %vm122 = vcmask 195712
    %v123 = vsel %vm122, %v121, %v116
    %v124 = vadd.s32 %v105, 4294967272
    %v125 = vlaneseq
    %v126 = vshrl.u32 %v125, 7
    %v127 = vsub.s32 %v124, %v126
    %v128 = vrot.slane %v78, %v127
    %vm129 = vcmask 261312
    %v130 = vsel %vm129, %v128, %v123
    %v131 = vlaneseq
    %v132 = vshrl.u32 %v131, 7
    %v133 = vsub.s32 %v105, %v132
    %v134 = vrot.slane %v79, %v133
    %v135 = vlaneseq
    %v136 = vshrl.u32 %v135, 7
    %v137 = vsub.s32 %v110, %v136
    %v138 = vrot.slane %v80, %v137
    %v139 = vsel %vm115, %v138, %v134
    %v140 = vlaneseq
    %v141 = vshrl.u32 %v140, 7
    %v142 = vsub.s32 %v117, %v141
    %v143 = vrot.slane %v81, %v142
    %v144 = vsel %vm122, %v143, %v139
    %v145 = vlaneseq
    %v146 = vshrl.u32 %v145, 7
    %v147 = vsub.s32 %v124, %v146
    %v148 = vrot.slane %v82, %v147
    %v149 = vsel %vm129, %v148, %v144
    %vm150 = vcmask 1041409
    %v151 = vsel %vm150, %v149, %v130
    %vm152 = vcmask 261120
    %v153 = vsel %vm152, %v151, 0
    %v156 = vsel %vm152, %v83, 0
    %158 = vmatprep.subr.mxu0 0.0
    %159 = vmatpush1.xpose.msra.mxu0 %v156
    %160 = vmatprep.subr.mxu0 0.0
    %161 = vmatpush1.xpose.msra.mxu0 0.0
    %162 = vmatprep.subr.mxu0 0.0
    %163 = vmatpush1.xpose.msra.mxu0 0.0
    %164 = vmatprep.subr.mxu0 0.0
    %165 = vmatpush1.xpose.msra.mxu0 0.0
    %166 = vmatprep.subr.mxu0 0.0
    %167 = vmatpush1.xpose.msra.mxu0 0.0
    %168 = vmatprep.subr.mxu0 0.0
    %169 = vmatpush1.xpose.msra.mxu0 0.0
    %170 = vmatprep.subr.mxu0 0.0
    %171 = vmatpush1.xpose.msra.mxu0 0.0
    %172 = vmatprep.subr.mxu0 0.0
    %173 = vmatpush1.xpose.msra.mxu0 0.0
    %174 = vmatprep.subr.mxu0 0.0
    %175 = vmatpush1.xpose.msra.mxu0 0.0
    %176 = vmatprep.subr.mxu0 0.0
    %177 = vmatpush1.xpose.msra.mxu0 0.0
    %178 = vmatprep.subr.mxu0 0.0
    %179 = vmatpush1.xpose.msra.mxu0 0.0
    %180 = vmatprep.subr.mxu0 0.0
    %181 = vmatpush1.xpose.msra.mxu0 0.0
    %182 = vmatprep.subr.mxu0 0.0
    %183 = vmatpush1.xpose.msra.mxu0 0.0
    %184 = vmatprep.subr.mxu0 0.0
    %185 = vmatpush1.xpose.msra.mxu0 0.0
    %186 = vmatprep.subr.mxu0 0.0
    %187 = vmatpush1.xpose.msra.mxu0 0.0
    %188 = vmatprep.subr.mxu0 0.0
    %189 = vmatpush1.xpose.msra.mxu0 0.0
    %190 = vmatprep.subr.mxu0 0.0
    %191 = vmatpush1.xpose.msra.mxu0 0.0
    %192 = vmatprep.subr.mxu0 0.0
    %193 = vmatpush1.xpose.msra.mxu0 0.0
    %194 = vmatprep.subr.mxu0 0.0
    %195 = vmatpush1.xpose.msra.mxu0 0.0
    %196 = vmatprep.subr.mxu0 0.0
    %197 = vmatpush1.xpose.msra.mxu0 0.0
    %198 = vmatprep.subr.mxu0 0.0
    %199 = vmatpush1.xpose.msra.mxu0 0.0
    %200 = vmatprep.subr.mxu0 0.0
    %201 = vmatpush1.xpose.msra.mxu0 0.0
    %202 = vmatprep.subr.mxu0 0.0
    %203 = vmatpush1.xpose.msra.mxu0 0.0
    %204 = vmatprep.subr.mxu0 0.0
    %205 = vmatpush1.xpose.msra.mxu0 0.0
    %206 = vmatprep.subr.mxu0 0.0
    %207 = vmatpush1.xpose.msra.mxu0 0.0
    %208 = vmatprep.subr.mxu0 0.0
    %209 = vmatpush1.xpose.msra.mxu0 0.0
    %210 = vmatprep.subr.mxu0 0.0
    %211 = vmatpush1.xpose.msra.mxu0 0.0
    %212 = vmatprep.subr.mxu0 0.0
    %213 = vmatpush1.xpose.msra.mxu0 0.0
    %214 = vmatprep.subr.mxu0 0.0
    %215 = vmatpush1.xpose.msra.mxu0 0.0
    %216 = vmatprep.subr.mxu0 0.0
    %217 = vmatpush1.xpose.msra.mxu0 0.0
    %218 = vmatprep.subr.mxu0 0.0
    %219 = vmatpush1.xpose.msra.mxu0 0.0
    %220 = vmatprep.subr.mxu0 0.0
    %221 = vmatpush1.xpose.msra.mxu0 0.0
    %222 = vmatprep.mubr.f32.mxu0 0.0
    %223 = vmatmul.mubr.f32.gmra.mrb[0].mxu0 %v153
    %v224 = vpop.f32.mrb[0].mxu0
    %v225 = vadd.f32 %v94, %v224
    %v226 = vpop.f32.mrb[0].mxu0
    %227 = vdwg.mxu0
    %v228 = vmax.f32 %v225, 0.0
    %v230 = vlaneseq
    %v231 = vshrl.u32 %v230, 7
    %v232 = vsub.s32 0, %v231
    %v233 = vrot.slane %v89, %v232
    %vm235 = vcmask 31744
    %v237 = vsel %vm235, %v228, 0
    %v240 = vsel %vm235, %v85, 0
    %v243 = vsel %vm235, %v86, 0
    %v246 = vsel %vm235, %v87, 0
    %v249 = vsel %vm235, %v88, 0
    %251 = vmatprep.subr.mxu0 0.0
    %252 = vmatpush1.xpose.msra.mxu0 %v240
    %253 = vmatprep.subr.mxu0 0.0
    %254 = vmatpush1.xpose.msra.mxu0 %v243
    %255 = vmatprep.subr.mxu0 0.0
    %256 = vmatpush1.xpose.msra.mxu0 %v246
    %257 = vmatprep.subr.mxu0 0.0
    %258 = vmatpush1.xpose.msra.mxu0 %v249
    %259 = vmatprep.subr.mxu0 0.0
    %260 = vmatpush1.xpose.msra.mxu0 0.0
    %261 = vmatprep.subr.mxu0 0.0
    %262 = vmatpush1.xpose.msra.mxu0 0.0
    %263 = vmatprep.subr.mxu0 0.0
    %264 = vmatpush1.xpose.msra.mxu0 0.0
    %265 = vmatprep.subr.mxu0 0.0
    %266 = vmatpush1.xpose.msra.mxu0 0.0
    %267 = vmatprep.subr.mxu0 0.0
    %268 = vmatpush1.xpose.msra.mxu0 0.0
    %269 = vmatprep.subr.mxu0 0.0
    %270 = vmatpush1.xpose.msra.mxu0 0.0
    %271 = vmatprep.subr.mxu0 0.0
    %272 = vmatpush1.xpose.msra.mxu0 0.0
    %273 = vmatprep.subr.mxu0 0.0
    %274 = vmatpush1.xpose.msra.mxu0 0.0
    %275 = vmatprep.subr.mxu0 0.0
    %276 = vmatpush1.xpose.msra.mxu0 0.0
    %277 = vmatprep.subr.mxu0 0.0
    %278 = vmatpush1.xpose.msra.mxu0 0.0
    %279 = vmatprep.subr.mxu0 0.0
    %280 = vmatpush1.xpose.msra.mxu0 0.0
    %281 = vmatprep.subr.mxu0 0.0
    %282 = vmatpush1.xpose.msra.mxu0 0.0
    %283 = vmatprep.subr.mxu0 0.0
    %284 = vmatpush1.xpose.msra.mxu0 0.0
    %285 = vmatprep.subr.mxu0 0.0
    %286 = vmatpush1.xpose.msra.mxu0 0.0
    %287 = vmatprep.subr.mxu0 0.0
    %288 = vmatpush1.xpose.msra.mxu0 0.0
    %289 = vmatprep.subr.mxu0 0.0
    %290 = vmatpush1.xpose.msra.mxu0 0.0
    %291 = vmatprep.subr.mxu0 0.0
    %292 = vmatpush1.xpose.msra.mxu0 0.0
    %293 = vmatprep.subr.mxu0 0.0
    %294 = vmatpush1.xpose.msra.mxu0 0.0
    %295 = vmatprep.subr.mxu0 0.0
    %296 = vmatpush1.xpose.msra.mxu0 0.0
    %297 = vmatprep.subr.mxu0 0.0
    %298 = vmatpush1.xpose.msra.mxu0 0.0
    %299 = vmatprep.subr.mxu0 0.0
    %300 = vmatpush1.xpose.msra.mxu0 0.0
    %301 = vmatprep.subr.mxu0 0.0
    %302 = vmatpush1.xpose.msra.mxu0 0.0
    %303 = vmatprep.subr.mxu0 0.0
    %304 = vmatpush1.xpose.msra.mxu0 0.0
    %305 = vmatprep.subr.mxu0 0.0
    %306 = vmatpush1.xpose.msra.mxu0 0.0
    %307 = vmatprep.subr.mxu0 0.0
    %308 = vmatpush1.xpose.msra.mxu0 0.0
    %309 = vmatprep.subr.mxu0 0.0
    %310 = vmatpush1.xpose.msra.mxu0 0.0
    %311 = vmatprep.subr.mxu0 0.0
    %312 = vmatpush1.xpose.msra.mxu0 0.0
    %313 = vmatprep.subr.mxu0 0.0
    %314 = vmatpush1.xpose.msra.mxu0 0.0
    %315 = vmatprep.mubr.f32.mxu0 0.0
    %316 = vmatmul.mubr.f32.gmra.mrb[0].mxu0 %v237
    %v317 = vpop.f32.mrb[0].mxu0
    %v318 = vadd.f32 %v233, %v317
    %v319 = vpop.f32.mrb[0].mxu0
    %320 = vdwg.mxu0
    %v321 = vxor.u32 %v318, 2147483648
    %v322 = vmul.f32 %v321, 1.442695
    %v323 = vpow.pop %v322
    %v324 = vadd.f32 %v323, 1.0
    %v325 = vrcp.pop %v324
    %v326 = vmul.f32 1.0, %v325
    %v327 = vlaneseq
    %v328 = vshrl.u32 %v327, 7
    %v329 = vsub.s32 0, %v328
    %v330 = vrot.slane %v326, %v329
    %332 = vbcast.lane.b32.xlu0 %v330, 256
    %v333 = vpop.permute.xlu0 %332
    %s335 = sor.u32 256, 8
    %336 = vbcast.lane.b32.xlu0 %v330, %s335
    %v337 = vpop.permute.xlu0 %336
    %s339 = sor.u32 256, 16
    %340 = vbcast.lane.b32.xlu0 %v330, %s339
    %v341 = vpop.permute.xlu0 %340
    %s343 = sor.u32 256, 24
    %344 = vbcast.lane.b32.xlu0 %v330, %s343
    %v345 = vpop.permute.xlu0 %344
    %v346 = vlaneseq
    %v347 = vshrl.u32 %v346, 7
    %v348 = vsub.s32 1, %v347
    %v349 = vrot.slane %v326, %v348
    %351 = vbcast.lane.b32.xlu0 %v349, 256
    %v352 = vpop.permute.xlu0 %351
    %s354 = sor.u32 256, 8
    %355 = vbcast.lane.b32.xlu0 %v349, %s354
    %v356 = vpop.permute.xlu0 %355
    %s358 = sor.u32 256, 16
    %359 = vbcast.lane.b32.xlu0 %v349, %s358
    %v360 = vpop.permute.xlu0 %359
    %s362 = sor.u32 256, 24
    %363 = vbcast.lane.b32.xlu0 %v349, %s362
    %v364 = vpop.permute.xlu0 %363
    %v365 = vmul.f32 %v35, %v333
    %v366 = vmul.f32 %v36, %v333
    %v367 = vmul.f32 %v37, %v337
    %v368 = vmul.f32 %v38, %v337
    %v369 = vmul.f32 %v39, %v341
    %v370 = vmul.f32 %v40, %v341
    %v371 = vmul.f32 %v41, %v345
    %v372 = vmul.f32 %v42, %v345
    %v373 = vmul.f32 %v43, %v352
    %v374 = vmul.f32 %v44, %v352
    %v375 = vmul.f32 %v45, %v356
    %v376 = vmul.f32 %v46, %v356
    %v377 = vmul.f32 %v47, %v360
    %v378 = vmul.f32 %v48, %v360
    %v379 = vmul.f32 %v49, %v364
    %v380 = vmul.f32 %v50, %v364
    %381 = vst [vmem:[#allocation5] sm:$0xff] %v365
    %382 = vst [vmem:[#allocation5 + $0x8] sm:$0xff] %v366
    %383 = vst [vmem:[#allocation5 + $0x10] sm:$0xff] %v367
    %384 = vst [vmem:[#allocation5 + $0x18] sm:$0xff] %v368
    %385 = vst [vmem:[#allocation5 + $0x20] sm:$0xff] %v369
    %386 = vst [vmem:[#allocation5 + $0x28] sm:$0xff] %v370
    %387 = vst [vmem:[#allocation5 + $0x30] sm:$0xff] %v371
    %388 = vst [vmem:[#allocation5 + $0x38] sm:$0xff] %v372
    %389 = vst [vmem:[#allocation5 + $0x40] sm:$0xff] %v373
    %390 = vst [vmem:[#allocation5 + $0x48] sm:$0xff] %v374
    %391 = vst [vmem:[#allocation5 + $0x50] sm:$0xff] %v375
    %392 = vst [vmem:[#allocation5 + $0x58] sm:$0xff] %v376
    %393 = vst [vmem:[#allocation5 + $0x60] sm:$0xff] %v377
    %394 = vst [vmem:[#allocation5 + $0x68] sm:$0xff] %v378
    %395 = vst [vmem:[#allocation5 + $0x70] sm:$0xff] %v379
    %396 = vst [vmem:[#allocation5 + $0x78] sm:$0xff] %v380
    // Predicated region
    $region26: #{tpu_custom_call.1} parent=1 // pred_check
      _
    $region27: #{tpu_custom_call.1} parent=1 // pred_check_branch
      %398 = sbr.rel (0) target = $region29
    $region28: #{tpu_custom_call.1} parent=1 // pred_region
      %s400 = ssub.s32 2048, 2048
      %401 = vsyncadd [#allocation4], %s400
      %s402 = sshll.u32 [#allocation5], 4
      %s403 = int_to_ptr.vmem [resolvable:$true] %s402
      %408 = dma.vmem_to_hbm [thread:$0]  %s403, 2048, %s5, [#allocation4], 256, 256, 16
    $region29: #{tpu_custom_call.1} parent=1 // pred_fallthru
      _
    // Predicated region
    $region30: #{tpu_custom_call.1} parent=1 // pred_check
      _
    $region31: #{tpu_custom_call.1} parent=1 // pred_check_branch
      %410 = sbr.rel (0) target = $region33
    $region32: #{tpu_custom_call.1} parent=1 // pred_region
      %411 = dma.done [#allocation4], 2048
    $region33: #{tpu_custom_call.1} parent=1 // pred_fallthru
      _
    %412 = vsyncpa [#allocation3], 1
    %413 = vsyncpa [#allocation4], 1

</llo_original>
